<compile_context>
chip_gen: v7x
topology: tpu7x:2x2x1
jax: 0.10.0
libtpu: 0.0.40
codegen_flags: <defaults>
</compile_context>

<pallas_src>
import math
from functools import partial

import jax
import jax.numpy as jnp
from jax.experimental import pallas as pl
from jax.experimental.pallas import tpu as pltpu


def _round_up(x, m):
    return ((x + m - 1) // m) * m


def actor_kernel(state_ref, zs_ref, w0_ref, w1_ref, w2_ref, w3_ref, bias_ref,
                 out_ref):
    eps = 1e-8
    hdim = w0_ref.shape[-1]
    zs_dim = zs_ref.shape[-1]
    out_cols = out_ref.shape[-1]
    cdt = w1_ref.dtype            # MXU operand dtype (bf16 fast path or f32)

    biases = bias_ref[...]        # (4, max(hdim, out_cols)) f32
    b0 = biases[0:1, :hdim]
    b1 = biases[1:2, :hdim]
    b2 = biases[2:3, :hdim]
    b3 = biases[3:4, :out_cols]

    # l0 (MXU, f32 accumulation) + AvgL1Norm in f32 with an exact reciprocal.
    x = jnp.dot(state_ref[...], w0_ref[...],
                preferred_element_type=jnp.float32) + b0
    denom = jnp.maximum(jnp.mean(jnp.abs(x), axis=-1, keepdims=True), eps)
    a = (x / denom).astype(cdt)

    # l1 on cat([a, zs], -1)  ==  a @ W1[:hdim] + zs @ W1[hdim:]
    w1a = w1_ref[pl.ds(0, hdim), :]
    w1b = w1_ref[pl.ds(hdim, zs_dim), :]
    h = (jnp.dot(a, w1a, preferred_element_type=jnp.float32)
         + jnp.dot(zs_ref[...], w1b, preferred_element_type=jnp.float32)
         + b1)
    h = jnp.maximum(h, 0.0).astype(cdt)

    # l2 + relu
    h = jnp.dot(h, w2_ref[...], preferred_element_type=jnp.float32) + b2
    h = jnp.maximum(h, 0.0).astype(cdt)

    # l3 + tanh.  Padded W3/b3 columns are zero -> tanh(0)=0, sliced off outside.
    y = jnp.dot(h, w3_ref[...], preferred_element_type=jnp.float32) + b3
    out_ref[...] = jnp.tanh(y)


def _pick_batch_tiling(B):
    """Returns (tile_b, padded_B).

    Two balanced tiles on 2-TC chips (v7x) so both TensorCores get work, one
    big tile on single-TC chips (v5e/v6e), and <=2048-row tiles for very large
    batches.  Padding is at most a few rows (sublane alignment), never a whole
    extra tile.
    """
    try:
        kind = jax.devices()[0].device_kind.lower()
    except Exception:
        kind = ""
    two_cores = ("v7" in kind) or ("7x" in kind)
    max_tile_rows = 2048                      # working set << VMEM, even on v7x
    n_tiles = max(1, -(-B // max_tile_rows))  # ceil div
    if two_cores and B > 32:
        n_tiles = max(n_tiles, 2)
    tile_b = _round_up(-(-B // n_tiles), 8)
    return tile_b, n_tiles * tile_b


def prep_actor_params(params, compute_dtype=jnp.bfloat16, lane_dense_output=True):
    """One-time parameter prep, hoisted out of the per-call path.

    * casts weights to the MXU operand dtype (bf16 by default),
    * optionally pads W3 to a lane-dense (multiple-of-128) output width,
    * packs the four f32 biases into one (4, width) slab (fewer operands).
    """
    hdim = params["w0"].shape[-1]
    action_dim = params["w3"].shape[-1]
    assert hdim % 8 == 0, "W1 split point (hdim) must be sublane aligned"
    if compute_dtype == jnp.bfloat16:
        assert hdim % 16 == 0, "bf16 sublane packing needs hdim % 16 == 0"

    out_cols = _round_up(action_dim, 128) if lane_dense_output else action_dim
    w3 = params["w3"]
    if out_cols != action_dim:
        w3 = jnp.pad(w3, ((0, 0), (0, out_cols - action_dim)))

    bw = max(hdim, out_cols)
    bias = jnp.zeros((4, bw), jnp.float32)
    bias = bias.at[0, :hdim].set(params["b0"])
    bias = bias.at[1, :hdim].set(params["b1"])
    bias = bias.at[2, :hdim].set(params["b2"])
    bias = bias.at[3, :action_dim].set(params["b3"])

    return dict(
        w0=params["w0"].astype(compute_dtype),
        w1=params["w1"].astype(compute_dtype),
        w2=params["w2"].astype(compute_dtype),
        w3=w3.astype(compute_dtype),
        bias=bias,
        action_dim=action_dim,
    )


@partial(jax.jit, static_argnames=("action_dim",))
def _actor_forward(state, zs, w0, w1, w2, w3, bias, *, action_dim):
    B, state_dim = state.shape
    zs_dim = zs.shape[-1]
    hdim = w0.shape[-1]
    out_cols = w3.shape[-1]
    cdt = w0.dtype

    tile_b, b_pad = _pick_batch_tiling(B)

    # Cast activations to the MXU operand dtype; the (<=15 row) pad and the
    # cast fuse into one small XLA op under jit.
    state_p = state.astype(cdt)
    zs_p = zs.astype(cdt)
    if b_pad != B:
        state_p = jnp.pad(state_p, ((0, b_pad - B), (0, 0)))
        zs_p = jnp.pad(zs_p, ((0, b_pad - B), (0, 0)))

    grid = (b_pad // tile_b,)
    out = pl.pallas_call(
        actor_kernel,
        grid=grid,
        in_specs=[
            pl.BlockSpec((tile_b, state_dim), lambda i: (i, 0)),
            pl.BlockSpec((tile_b, zs_dim), lambda i: (i, 0)),
            # Weights/biases: constant block index -> VMEM-resident across tiles.
            # TODO(synk): for hdim>=256 on v7x, add pipeline_mode=pl.Buffered(1)
            # to these specs to drop their redundant second VMEM buffer.
            pl.BlockSpec((state_dim, hdim), lambda i: (0, 0)),
            pl.BlockSpec((hdim + zs_dim, hdim), lambda i: (0, 0)),
            pl.BlockSpec((hdim, hdim), lambda i: (0, 0)),
            pl.BlockSpec((hdim, out_cols), lambda i: (0, 0)),
            pl.BlockSpec((4, bias.shape[-1]), lambda i: (0, 0)),
        ],
        out_specs=pl.BlockSpec((tile_b, out_cols), lambda i: (i, 0)),
        out_shape=jax.ShapeDtypeStruct((b_pad, out_cols), jnp.float32),
        compiler_params=pltpu.CompilerParams(
            dimension_semantics=("parallel",)),
    )(state_p, zs_p, w0, w1, w2, w3, bias)

    return out[:B, :action_dim]


def actor_forward(state, zs, prepped):
    """state: (B, state_dim) f32, zs: (B, zs_dim) f32 -> (B, action_dim) f32."""
    return _actor_forward(state, zs, prepped["w0"], prepped["w1"],
                          prepped["w2"], prepped["w3"], prepped["bias"],
                          action_dim=prepped["action_dim"])


def init_actor_params(key, state_dim, action_dim, zs_dim, hdim):
    """Deterministic PyTorch-Linear-style init: U(-1/sqrt(fan_in), 1/sqrt(fan_in))."""
    def linear(key, fan_in, fan_out):
        kw, kb = jax.random.split(key)
        bound = 1.0 / math.sqrt(fan_in)
        w = jax.random.uniform(kw, (fan_in, fan_out), jnp.float32, -bound, bound)
        b = jax.random.uniform(kb, (fan_out,), jnp.float32, -bound, bound)
        return w, b

    k0, k1, k2, k3 = jax.random.split(key, 4)
    w0, b0 = linear(k0, state_dim, hdim)
    w1, b1 = linear(k1, zs_dim + hdim, hdim)   # rows [:hdim] act on a, [hdim:] on zs
    w2, b2 = linear(k2, hdim, hdim)
    w3, b3 = linear(k3, hdim, action_dim)
    return dict(w0=w0, b0=b0, w1=w1, b1=b1, w2=w2, b2=b2, w3=w3, b3=b3)


def actor_reference(state, zs, params):
    """Pure-JAX reference (full-precision matmuls) for correctness checking."""
    eps = 1e-8
    dot = lambda a, b: jnp.dot(a, b, precision=jax.lax.Precision.HIGHEST)
    x = dot(state, params["w0"]) + params["b0"]
    a = x / jnp.maximum(jnp.mean(jnp.abs(x), axis=-1, keepdims=True), eps)
    cat = jnp.concatenate([a, zs], axis=1)
    h = jax.nn.relu(dot(cat, params["w1"]) + params["b1"])
    h = jax.nn.relu(dot(h, params["w2"]) + params["b2"])
    return jnp.tanh(dot(h, params["w3"]) + params["b3"])


if __name__ == "__main__":
    key = jax.random.PRNGKey(0)

    # (B, state_dim, action_dim, zs_dim, hdim): tiny original shapes plus a
    # case that exercises padding / multi-tile / megacore paths.
    cases = [(4, 16, 8, 32, 32), (300, 24, 6, 64, 64)]
    for B, state_dim, action_dim, zs_dim, hdim in cases:
        key, k_state, k_zs, k_params = jax.random.split(key, 4)
        state = jax.random.normal(k_state, (B, state_dim), jnp.float32)
        zs = jax.random.normal(k_zs, (B, zs_dim), jnp.float32)
        params = init_actor_params(k_params, state_dim, action_dim, zs_dim, hdim)
        ref = actor_reference(state, zs, params)

        # f32 path: tight parity restored (approx reciprocal removed).
        prep_f32 = prep_actor_params(params, compute_dtype=jnp.float32)
        out_f32 = jax.block_until_ready(actor_forward(state, zs, prep_f32))
        assert out_f32.shape == (B, action_dim)
        assert jnp.allclose(out_f32, ref, atol=1e-5, rtol=1e-4), "f32 mismatch"

        # bf16 MXU fast path (f32 accumulation + f32 elementwise math); error is
        # bounded by bf16 quantization of the matmul operands.
        prep_bf16 = prep_actor_params(params, compute_dtype=jnp.bfloat16)
        out_bf16 = jax.block_until_ready(actor_forward(state, zs, prep_bf16))
        assert out_bf16.shape == (B, action_dim)
        assert jnp.allclose(out_bf16, ref, atol=3e-2, rtol=3e-2), "bf16 mismatch"

    print("KERNEL_OK")
</pallas_src>

<mosaic_0001>
module attributes {stable_mosaic.version = 11 : i64} {
  func.func @actor_kernel(%arg0: i32, %arg1: memref<8x16xf32, #tpu.memory_space<vmem>>, %arg2: memref<8x32xf32, #tpu.memory_space<vmem>>, %arg3: memref<16x32xf32, #tpu.memory_space<vmem>>, %arg4: memref<64x32xf32, #tpu.memory_space<vmem>>, %arg5: memref<32x32xf32, #tpu.memory_space<vmem>>, %arg6: memref<32x128xf32, #tpu.memory_space<vmem>>, %arg7: memref<4x128xf32, #tpu.memory_space<vmem>>, %arg8: memref<8x128xf32, #tpu.memory_space<vmem>>) attributes {dimension_semantics = [#tpu.dimension_semantics<parallel>], iteration_bounds = array<i64: 1>, scalar_prefetch = 0 : i64, scratch_operands = 0 : i64, tpu.core_type = #tpu.core_type<tc>, window_params = [{transform_indices = @transform_0, window_bounds = array<i64: 8, 16>}, {transform_indices = @transform_1, window_bounds = array<i64: 8, 32>}, {pipeline_mode = #tpu.pipeline_mode<synchronous>, transform_indices = @transform_2, window_bounds = array<i64: 16, 32>}, {pipeline_mode = #tpu.pipeline_mode<synchronous>, transform_indices = @transform_3, window_bounds = array<i64: 64, 32>}, {pipeline_mode = #tpu.pipeline_mode<synchronous>, transform_indices = @transform_4, window_bounds = array<i64: 32, 32>}, {pipeline_mode = #tpu.pipeline_mode<synchronous>, transform_indices = @transform_5, window_bounds = array<i64: 32, 128>}, {pipeline_mode = #tpu.pipeline_mode<synchronous>, transform_indices = @transform_6, window_bounds = array<i64: 4, 128>}, {transform_indices = @transform_7, window_bounds = array<i64: 8, 128>}]} {
    %c0 = arith.constant 0 : index
    %c0_0 = arith.constant 0 : index
    %0 = vector.load %arg7[%c0, %c0_0] : memref<4x128xf32, #tpu.memory_space<vmem>>, vector<4x128xf32>
    %1 = vector.extract_strided_slice %0 {offsets = [0, 0], sizes = [1, 32], strides = [1, 1]} : vector<4x128xf32> to vector<1x32xf32>
    %2 = vector.extract_strided_slice %0 {offsets = [1, 0], sizes = [1, 32], strides = [1, 1]} : vector<4x128xf32> to vector<1x32xf32>
    %3 = vector.extract_strided_slice %0 {offsets = [2, 0], sizes = [1, 32], strides = [1, 1]} : vector<4x128xf32> to vector<1x32xf32>
    %4 = vector.extract_strided_slice %0 {offsets = [3, 0], sizes = [1, 128], strides = [1, 1]} : vector<4x128xf32> to vector<1x128xf32>
    %c0_1 = arith.constant 0 : index
    %c0_2 = arith.constant 0 : index
    %5 = vector.load %arg1[%c0_1, %c0_2] : memref<8x16xf32, #tpu.memory_space<vmem>>, vector<8x16xf32>
    %c0_3 = arith.constant 0 : index
    %c0_4 = arith.constant 0 : index
    %6 = vector.load %arg3[%c0_3, %c0_4] : memref<16x32xf32, #tpu.memory_space<vmem>>, vector<16x32xf32>
    %cst = arith.constant dense<0.000000e+00> : vector<8x32xf32>
    %7 = tpu.matmul %5, %6, %cst {dimension_numbers = #tpu.dot_dimension_numbers<[1], [0], [0], [1], [0, 0, 1, 1], [], []>} : vector<8x16xf32>, vector<16x32xf32>, vector<8x32xf32> -> vector<8x32xf32>
    %8 = vector.broadcast %1 : vector<1x32xf32> to vector<8x32xf32>
    %9 = arith.addf %7, %8 : vector<8x32xf32>
    %10 = math.absf %9 : vector<8x32xf32>
    %cst_5 = arith.constant dense<0.000000e+00> : vector<8xf32>
    %11 = vector.multi_reduction <add>, %10, %cst_5 [1] : vector<8x32xf32> to vector<8xf32>
    %12 = vector.shape_cast %11 : vector<8xf32> to vector<8x1xf32>
    %cst_6 = arith.constant 3.200000e+01 : f32
    %13 = vector.broadcast %cst_6 : f32 to vector<8x1xf32>
    %14 = arith.divf %12, %13 : vector<8x1xf32>
    %cst_7 = arith.constant 9.99999993E-9 : f32
    %15 = vector.broadcast %cst_7 : f32 to vector<8x1xf32>
    %16 = arith.maximumf %14, %15 : vector<8x1xf32>
    %17 = vector.broadcast %16 : vector<8x1xf32> to vector<8x32xf32>
    %18 = arith.divf %9, %17 : vector<8x32xf32>
    %c0_8 = arith.constant 0 : index
    %c0_9 = arith.constant 0 : index
    %19 = vector.load %arg4[%c0_8, %c0_9] : memref<64x32xf32, #tpu.memory_space<vmem>>, vector<32x32xf32>
    %c32 = arith.constant 32 : index
    %c0_10 = arith.constant 0 : index
    %20 = vector.load %arg4[%c32, %c0_10] : memref<64x32xf32, #tpu.memory_space<vmem>>, vector<32x32xf32>
    %cst_11 = arith.constant dense<0.000000e+00> : vector<8x32xf32>
    %21 = tpu.matmul %18, %19, %cst_11 {dimension_numbers = #tpu.dot_dimension_numbers<[1], [0], [0], [1], [0, 0, 1, 1], [], []>} : vector<8x32xf32>, vector<32x32xf32>, vector<8x32xf32> -> vector<8x32xf32>
    %c0_12 = arith.constant 0 : index
    %c0_13 = arith.constant 0 : index
    %22 = vector.load %arg2[%c0_12, %c0_13] : memref<8x32xf32, #tpu.memory_space<vmem>>, vector<8x32xf32>
    %cst_14 = arith.constant dense<0.000000e+00> : vector<8x32xf32>
    %23 = tpu.matmul %22, %20, %cst_14 {dimension_numbers = #tpu.dot_dimension_numbers<[1], [0], [0], [1], [0, 0, 1, 1], [], []>} : vector<8x32xf32>, vector<32x32xf32>, vector<8x32xf32> -> vector<8x32xf32>
    %24 = arith.addf %21, %23 : vector<8x32xf32>
    %25 = vector.broadcast %2 : vector<1x32xf32> to vector<8x32xf32>
    %26 = arith.addf %24, %25 : vector<8x32xf32>
    %cst_15 = arith.constant 0.000000e+00 : f32
    %27 = vector.broadcast %cst_15 : f32 to vector<8x32xf32>
    %28 = arith.maximumf %26, %27 : vector<8x32xf32>
    %c0_16 = arith.constant 0 : index
    %c0_17 = arith.constant 0 : index
    %29 = vector.load %arg5[%c0_16, %c0_17] : memref<32x32xf32, #tpu.memory_space<vmem>>, vector<32x32xf32>
    %cst_18 = arith.constant dense<0.000000e+00> : vector<8x32xf32>
    %30 = tpu.matmul %28, %29, %cst_18 {dimension_numbers = #tpu.dot_dimension_numbers<[1], [0], [0], [1], [0, 0, 1, 1], [], []>} : vector<8x32xf32>, vector<32x32xf32>, vector<8x32xf32> -> vector<8x32xf32>
    %31 = vector.broadcast %3 : vector<1x32xf32> to vector<8x32xf32>
    %32 = arith.addf %30, %31 : vector<8x32xf32>
    %cst_19 = arith.constant 0.000000e+00 : f32
    %33 = vector.broadcast %cst_19 : f32 to vector<8x32xf32>
    %34 = arith.maximumf %32, %33 : vector<8x32xf32>
    %c0_20 = arith.constant 0 : index
    %c0_21 = arith.constant 0 : index
    %35 = vector.load %arg6[%c0_20, %c0_21] : memref<32x128xf32, #tpu.memory_space<vmem>>, vector<32x128xf32>
    %cst_22 = arith.constant dense<0.000000e+00> : vector<8x128xf32>
    %36 = tpu.matmul %34, %35, %cst_22 {dimension_numbers = #tpu.dot_dimension_numbers<[1], [0], [0], [1], [0, 0, 1, 1], [], []>} : vector<8x32xf32>, vector<32x128xf32>, vector<8x128xf32> -> vector<8x128xf32>
    %37 = vector.broadcast %4 : vector<1x128xf32> to vector<8x128xf32>
    %38 = arith.addf %36, %37 : vector<8x128xf32>
    %39 = math.tanh %38 : vector<8x128xf32>
    %c0_23 = arith.constant 0 : index
    %c0_24 = arith.constant 0 : index
    %40 = vector.load %arg8[%c0_23, %c0_24] : memref<8x128xf32, #tpu.memory_space<vmem>>, vector<8x128xf32>
    tpu.vector_store %arg8[%c0_23, %c0_24], %39 {strides = array<i32>} : memref<8x128xf32, #tpu.memory_space<vmem>>, vector<8x128xf32>,
    return
  }
  func.func @transform_0(%arg0: i32) -> (i32, i32) {
    %c0_i32 = arith.constant 0 : i32
    %c0_i32_0 = arith.constant 0 : i32
    return %arg0, %c0_i32 : i32, i32
  }
  func.func @transform_1(%arg0: i32) -> (i32, i32) {
    %c0_i32 = arith.constant 0 : i32
    %c0_i32_0 = arith.constant 0 : i32
    return %arg0, %c0_i32 : i32, i32
  }
  func.func @transform_2(%arg0: i32) -> (i32, i32) {
    %c0_i32 = arith.constant 0 : i32
    %c0_i32_0 = arith.constant 0 : i32
    %c0_i32_1 = arith.constant 0 : i32
    return %c0_i32, %c0_i32_0 : i32, i32
  }
  func.func @transform_3(%arg0: i32) -> (i32, i32) {
    %c0_i32 = arith.constant 0 : i32
    %c0_i32_0 = arith.constant 0 : i32
    %c0_i32_1 = arith.constant 0 : i32
    return %c0_i32, %c0_i32_0 : i32, i32
  }
  func.func @transform_4(%arg0: i32) -> (i32, i32) {
    %c0_i32 = arith.constant 0 : i32
    %c0_i32_0 = arith.constant 0 : i32
    %c0_i32_1 = arith.constant 0 : i32
    return %c0_i32, %c0_i32_0 : i32, i32
  }
  func.func @transform_5(%arg0: i32) -> (i32, i32) {
    %c0_i32 = arith.constant 0 : i32
    %c0_i32_0 = arith.constant 0 : i32
    %c0_i32_1 = arith.constant 0 : i32
    return %c0_i32, %c0_i32_0 : i32, i32
  }
  func.func @transform_6(%arg0: i32) -> (i32, i32) {
    %c0_i32 = arith.constant 0 : i32
    %c0_i32_0 = arith.constant 0 : i32
    %c0_i32_1 = arith.constant 0 : i32
    return %c0_i32, %c0_i32_0 : i32, i32
  }
  func.func @transform_7(%arg0: i32) -> (i32, i32) {
    %c0_i32 = arith.constant 0 : i32
    %c0_i32_0 = arith.constant 0 : i32
    return %arg0, %c0_i32 : i32, i32
  }
}

</mosaic_0001>

<llo_original>
// kernel: _actor_forward.1
$region0: #{_actor_forward.1}
  #allocation0 [shape = 'u32[]', space=smem, size = 0x4, offset = 0x4, fixed_abs, tag = 'smem constant byte address 0x4 - core index']
  #allocation1 [shape = 'u32[144,128]{1,0:T(1,128)}', space=vmem, size = 0x12000, scoped, tag = 'internal scratch']
  %s0 = inlined_call_operand.vmem [shape: f32[8,16], index: 0, kind: input, shape index: {}]
  %s1 = inlined_call_operand.vmem [shape: f32[8,32], index: 1, kind: input, shape index: {}]
  %s2 = inlined_call_operand.vmem [shape: f32[16,32], index: 2, kind: input, shape index: {}]
  %s3 = inlined_call_operand.vmem [shape: f32[64,32], index: 3, kind: input, shape index: {}]
  %s4 = inlined_call_operand.vmem [shape: f32[32,32], index: 4, kind: input, shape index: {}]
  %s5 = inlined_call_operand.vmem [shape: f32[32,128], index: 5, kind: input, shape index: {}]
  %s6 = inlined_call_operand.vmem [shape: f32[4,128], index: 6, kind: input, shape index: {}]
  %s7 = inlined_call_operand.vmem [shape: f32[8,128], index: 7, kind: output, shape index: {}]
  %s8 = sld [smem:[#allocation0]]
  $region38: #{_actor_forward.1} parent=0
    _
  %s10 = ssub.s32 1, %s8
  %s11 = scalar_select 0, %s10, %s8
  // Predicated region
  $region2: #{_actor_forward.1} parent=0 // pred_check
    _
  $region3: #{_actor_forward.1} parent=0 // pred_check_branch
    %13 = sbr.rel (0) target = $region5
  $region4: #{_actor_forward.1} parent=0 // pred_region
    _
  $region5: #{_actor_forward.1} parent=0 // pred_fallthru
    _
  // Predicated region
  $region6: #{_actor_forward.1} parent=0 // pred_check
    _
  $region7: #{_actor_forward.1} parent=0 // pred_check_branch
    %15 = sbr.rel (0) target = $region9
  $region8: #{_actor_forward.1} parent=0 // pred_region
    _
  $region9: #{_actor_forward.1} parent=0 // pred_fallthru
    _
  // Predicated region
  $region10: #{_actor_forward.1} parent=0 // pred_check
    _
  $region11: #{_actor_forward.1} parent=0 // pred_check_branch
    %17 = sbr.rel (0) target = $region13
  $region12: #{_actor_forward.1} parent=0 // pred_region
    _
  $region13: #{_actor_forward.1} parent=0 // pred_fallthru
    _
  // Predicated region
  $region14: #{_actor_forward.1} parent=0 // pred_check
    _
  $region15: #{_actor_forward.1} parent=0 // pred_check_branch
    %19 = sbr.rel (0) target = $region17
  $region16: #{_actor_forward.1} parent=0 // pred_region
    _
  $region17: #{_actor_forward.1} parent=0 // pred_fallthru
    _
  // Predicated region
  $region18: #{_actor_forward.1} parent=0 // pred_check
    _
  $region19: #{_actor_forward.1} parent=0 // pred_check_branch
    %21 = sbr.rel (0) target = $region21
  $region20: #{_actor_forward.1} parent=0 // pred_region
    _
  $region21: #{_actor_forward.1} parent=0 // pred_fallthru
    _
  // Predicated region
  $region22: #{_actor_forward.1} parent=0 // pred_check
    _
  $region23: #{_actor_forward.1} parent=0 // pred_check_branch
    %23 = sbr.rel (0) target = $region25
  $region24: #{_actor_forward.1} parent=0 // pred_region
    _
  $region25: #{_actor_forward.1} parent=0 // pred_fallthru
    _
  // Predicated region
  $region26: #{_actor_forward.1} parent=0 // pred_check
    _
  $region27: #{_actor_forward.1} parent=0 // pred_check_branch
    %25 = sbr.rel (0) target = $region29
  $region28: #{_actor_forward.1} parent=0 // pred_region
    _
  $region29: #{_actor_forward.1} parent=0 // pred_fallthru
    _
  %v26 = vld [vmem:[%s6] sm:$0xf]
  %v27 = vld [vmem:[%s0] sm:$0xff]
  %v28 = vld [vmem:[%s2] sm:$0xff]
  %v29 = vld [vmem:[%s2 + $0x8] sm:$0xff]
  %v30 = vlaneseq
  %v31 = vshrl.u32 %v30, 7
  %v32 = vsub.s32 0, %v31
  %v33 = vrot.slane %v26, %v32
  %vm34 = vcmask 130048
  %v36 = vsel %vm34, %v27, 0
  %38 = vmatprep.subr.mxu0 0.0
  %39 = vmatpush1.msra.mxu0 %v28
  %40 = vmatprep.subr.mxu0 0.0
  %41 = vmatpush1.msra.mxu0 %v29
  %42 = vmatprep.subr.mxu0 0.0
  %43 = vmatpush1.msra.mxu0 0.0
  %44 = vmatprep.subr.mxu0 0.0
  %45 = vmatpush1.msra.mxu0 0.0
  %46 = vmatprep.subr.mxu0 0.0
  %47 = vmatpush1.msra.mxu0 0.0
  %48 = vmatprep.subr.mxu0 0.0
  %49 = vmatpush1.msra.mxu0 0.0
  %50 = vmatprep.subr.mxu0 0.0
  %51 = vmatpush1.msra.mxu0 0.0
  %52 = vmatprep.subr.mxu0 0.0
  %53 = vmatpush1.msra.mxu0 0.0
  %54 = vmatprep.subr.mxu0 0.0
  %55 = vmatpush1.msra.mxu0 0.0
  %56 = vmatprep.subr.mxu0 0.0
  %57 = vmatpush1.msra.mxu0 0.0
  %58 = vmatprep.subr.mxu0 0.0
  %59 = vmatpush1.msra.mxu0 0.0
  %60 = vmatprep.subr.mxu0 0.0
  %61 = vmatpush1.msra.mxu0 0.0
  %62 = vmatprep.subr.mxu0 0.0
  %63 = vmatpush1.msra.mxu0 0.0
  %64 = vmatprep.subr.mxu0 0.0
  %65 = vmatpush1.msra.mxu0 0.0
  %66 = vmatprep.subr.mxu0 0.0
  %67 = vmatpush1.msra.mxu0 0.0
  %68 = vmatprep.subr.mxu0 0.0
  %69 = vmatpush1.msra.mxu0 0.0
  %70 = vmatprep.subr.mxu0 0.0
  %71 = vmatpush1.msra.mxu0 0.0
  %72 = vmatprep.subr.mxu0 0.0
  %73 = vmatpush1.msra.mxu0 0.0
  %74 = vmatprep.subr.mxu0 0.0
  %75 = vmatpush1.msra.mxu0 0.0
  %76 = vmatprep.subr.mxu0 0.0
  %77 = vmatpush1.msra.mxu0 0.0
  %78 = vmatprep.subr.mxu0 0.0
  %79 = vmatpush1.msra.mxu0 0.0
  %80 = vmatprep.subr.mxu0 0.0
  %81 = vmatpush1.msra.mxu0 0.0
  %82 = vmatprep.subr.mxu0 0.0
  %83 = vmatpush1.msra.mxu0 0.0
  %84 = vmatprep.subr.mxu0 0.0
  %85 = vmatpush1.msra.mxu0 0.0
  %86 = vmatprep.subr.mxu0 0.0
  %87 = vmatpush1.msra.mxu0 0.0
  %88 = vmatprep.subr.mxu0 0.0
  %89 = vmatpush1.msra.mxu0 0.0
  %90 = vmatprep.subr.mxu0 0.0
  %91 = vmatpush1.msra.mxu0 0.0
  %92 = vmatprep.subr.mxu0 0.0
  %93 = vmatpush1.msra.mxu0 0.0
  %94 = vmatprep.subr.mxu0 0.0
  %95 = vmatpush1.msra.mxu0 0.0
  %96 = vmatprep.subr.mxu0 0.0
  %97 = vmatpush1.msra.mxu0 0.0
  %98 = vmatprep.subr.mxu0 0.0
  %99 = vmatpush1.msra.mxu0 0.0
  %100 = vmatprep.subr.mxu0 0.0
  %101 = vmatpush1.msra.mxu0 0.0
  %102 = vmatprep.mubr.f32.mxu0 0.0
  %103 = vmatmul.mubr.f32.gmra.mrb[0].mxu0 %v36
  %v104 = vpop.f32.mrb[0].mxu0
  %v105 = vadd.f32 %v33, %v104
  %v106 = vpop.f32.mrb[0].mxu0
  %107 = vdwg.mxu0
  %v108 = vand.u32 2147483647, %v105
  %vm109 = vcmask 261120
  %v110 = vsel %vm109, %v108, 0.0
  %111 = vadd.xlane.f32.xlu0 %v110
  %v112 = vpop.xlane.xlu0 %111
  %v113 = vrcp.pop 32.0
  %v114 = vmul.f32 %v112, %v113
  %v115 = vmax.f32 %v114, 1e-08
  %v116 = vrcp.pop %v115
  %v117 = vmul.f32 %v105, %v116
  %v118 = vld [vmem:[%s3] sm:$0xff]
  %v119 = vld [vmem:[%s3 + $0x8] sm:$0xff]
  %v120 = vld [vmem:[%s3 + $0x10] sm:$0xff]
  %v121 = vld [vmem:[%s3 + $0x18] sm:$0xff]
  %v122 = vld [vmem:[%s3 + $0x20] sm:$0xff]
  %v123 = vld [vmem:[%s3 + $0x28] sm:$0xff]
  %v124 = vld [vmem:[%s3 + $0x30] sm:$0xff]
  %v125 = vld [vmem:[%s3 + $0x38] sm:$0xff]
  %v126 = vld [vmem:[%s1] sm:$0xff]
  %v128 = vsel %vm109, %v126, 0
  %130 = vmatprep.subr.mxu0 0.0
  %131 = vmatpush1.msra.mxu0 %v122
  %132 = vmatprep.subr.mxu0 0.0
  %133 = vmatpush1.msra.mxu0 %v123
  %134 = vmatprep.subr.mxu0 0.0
  %135 = vmatpush1.msra.mxu0 %v124
  %136 = vmatprep.subr.mxu0 0.0
  %137 = vmatpush1.msra.mxu0 %v125
  %138 = vmatprep.subr.mxu0 0.0
  %139 = vmatpush1.msra.mxu0 0.0
  %140 = vmatprep.subr.mxu0 0.0
  %141 = vmatpush1.msra.mxu0 0.0
  %142 = vmatprep.subr.mxu0 0.0
  %143 = vmatpush1.msra.mxu0 0.0
  %144 = vmatprep.subr.mxu0 0.0
  %145 = vmatpush1.msra.mxu0 0.0
  %146 = vmatprep.subr.mxu0 0.0
  %147 = vmatpush1.msra.mxu0 0.0
  %148 = vmatprep.subr.mxu0 0.0
  %149 = vmatpush1.msra.mxu0 0.0
  %150 = vmatprep.subr.mxu0 0.0
  %151 = vmatpush1.msra.mxu0 0.0
  %152 = vmatprep.subr.mxu0 0.0
  %153 = vmatpush1.msra.mxu0 0.0
  %154 = vmatprep.subr.mxu0 0.0
  %155 = vmatpush1.msra.mxu0 0.0
  %156 = vmatprep.subr.mxu0 0.0
  %157 = vmatpush1.msra.mxu0 0.0
  %158 = vmatprep.subr.mxu0 0.0
  %159 = vmatpush1.msra.mxu0 0.0
  %160 = vmatprep.subr.mxu0 0.0
  %161 = vmatpush1.msra.mxu0 0.0
  %162 = vmatprep.subr.mxu0 0.0
  %163 = vmatpush1.msra.mxu0 0.0
  %164 = vmatprep.subr.mxu0 0.0
  %165 = vmatpush1.msra.mxu0 0.0
  %166 = vmatprep.subr.mxu0 0.0
  %167 = vmatpush1.msra.mxu0 0.0
  %168 = vmatprep.subr.mxu0 0.0
  %169 = vmatpush1.msra.mxu0 0.0
  %170 = vmatprep.subr.mxu0 0.0
  %171 = vmatpush1.msra.mxu0 0.0
  %172 = vmatprep.subr.mxu0 0.0
  %173 = vmatpush1.msra.mxu0 0.0
  %174 = vmatprep.subr.mxu0 0.0
  %175 = vmatpush1.msra.mxu0 0.0
  %176 = vmatprep.subr.mxu0 0.0
  %177 = vmatpush1.msra.mxu0 0.0
  %178 = vmatprep.subr.mxu0 0.0
  %179 = vmatpush1.msra.mxu0 0.0
  %180 = vmatprep.subr.mxu0 0.0
  %181 = vmatpush1.msra.mxu0 0.0
  %182 = vmatprep.subr.mxu0 0.0
  %183 = vmatpush1.msra.mxu0 0.0
  %184 = vmatprep.subr.mxu0 0.0
  %185 = vmatpush1.msra.mxu0 0.0
  %186 = vmatprep.subr.mxu0 0.0
  %187 = vmatpush1.msra.mxu0 0.0
  %188 = vmatprep.subr.mxu0 0.0
  %189 = vmatpush1.msra.mxu0 0.0
  %190 = vmatprep.subr.mxu0 0.0
  %191 = vmatpush1.msra.mxu0 0.0
  %192 = vmatprep.subr.mxu0 0.0
  %193 = vmatpush1.msra.mxu0 0.0
  %194 = vmatprep.mubr.f32.mxu0 0.0
  %195 = vmatmul.mubr.f32.gmra.mrb[0].mxu0 %v128
  %v196 = vpop.f32.mrb[0].mxu0
  %v197 = vadd.f32 0.0, %v196
  %v198 = vpop.f32.mrb[0].mxu0
  %199 = vdwg.mxu0
  %v201 = vsel %vm109, %v117, 0
  %203 = vmatprep.subr.mxu0 0.0
  %204 = vmatpush1.msra.mxu0 %v118
  %205 = vmatprep.subr.mxu0 0.0
  %206 = vmatpush1.msra.mxu0 %v119
  %207 = vmatprep.subr.mxu0 0.0
  %208 = vmatpush1.msra.mxu0 %v120
  %209 = vmatprep.subr.mxu0 0.0
  %210 = vmatpush1.msra.mxu0 %v121
  %211 = vmatprep.subr.mxu0 0.0
  %212 = vmatpush1.msra.mxu0 0.0
  %213 = vmatprep.subr.mxu0 0.0
  %214 = vmatpush1.msra.mxu0 0.0
  %215 = vmatprep.subr.mxu0 0.0
  %216 = vmatpush1.msra.mxu0 0.0
  %217 = vmatprep.subr.mxu0 0.0
  %218 = vmatpush1.msra.mxu0 0.0
  %219 = vmatprep.subr.mxu0 0.0
  %220 = vmatpush1.msra.mxu0 0.0
  %221 = vmatprep.subr.mxu0 0.0
  %222 = vmatpush1.msra.mxu0 0.0
  %223 = vmatprep.subr.mxu0 0.0
  %224 = vmatpush1.msra.mxu0 0.0
  %225 = vmatprep.subr.mxu0 0.0
  %226 = vmatpush1.msra.mxu0 0.0
  %227 = vmatprep.subr.mxu0 0.0
  %228 = vmatpush1.msra.mxu0 0.0
  %229 = vmatprep.subr.mxu0 0.0
  %230 = vmatpush1.msra.mxu0 0.0
  %231 = vmatprep.subr.mxu0 0.0
  %232 = vmatpush1.msra.mxu0 0.0
  %233 = vmatprep.subr.mxu0 0.0
  %234 = vmatpush1.msra.mxu0 0.0
  %235 = vmatprep.subr.mxu0 0.0
  %236 = vmatpush1.msra.mxu0 0.0
  %237 = vmatprep.subr.mxu0 0.0
  %238 = vmatpush1.msra.mxu0 0.0
  %239 = vmatprep.subr.mxu0 0.0
  %240 = vmatpush1.msra.mxu0 0.0
  %241 = vmatprep.subr.mxu0 0.0
  %242 = vmatpush1.msra.mxu0 0.0
  %243 = vmatprep.subr.mxu0 0.0
  %244 = vmatpush1.msra.mxu0 0.0
  %245 = vmatprep.subr.mxu0 0.0
  %246 = vmatpush1.msra.mxu0 0.0
  %247 = vmatprep.subr.mxu0 0.0
  %248 = vmatpush1.msra.mxu0 0.0
  %249 = vmatprep.subr.mxu0 0.0
  %250 = vmatpush1.msra.mxu0 0.0
  %251 = vmatprep.subr.mxu0 0.0
  %252 = vmatpush1.msra.mxu0 0.0
  %253 = vmatprep.subr.mxu0 0.0
  %254 = vmatpush1.msra.mxu0 0.0
  %255 = vmatprep.subr.mxu0 0.0
  %256 = vmatpush1.msra.mxu0 0.0
  %257 = vmatprep.subr.mxu0 0.0
  %258 = vmatpush1.msra.mxu0 0.0
  %259 = vmatprep.subr.mxu0 0.0
  %260 = vmatpush1.msra.mxu0 0.0
  %261 = vmatprep.subr.mxu0 0.0
  %262 = vmatpush1.msra.mxu0 0.0
  %263 = vmatprep.subr.mxu0 0.0
  %264 = vmatpush1.msra.mxu0 0.0
  %265 = vmatprep.subr.mxu0 0.0
  %266 = vmatpush1.msra.mxu0 0.0
  %267 = vmatprep.mubr.f32.mxu0 0.0
  %268 = vmatmul.mubr.f32.gmra.mrb[0].mxu0 %v201
  %v269 = vpop.f32.mrb[0].mxu0
  %v270 = vadd.f32 %v197, %v269
  %v271 = vpop.f32.mrb[0].mxu0
  %272 = vdwg.mxu0
  %v273 = vlaneseq
  %v274 = vshrl.u32 %v273, 7
  %v275 = vsub.s32 1, %v274
  %v276 = vrot.slane %v26, %v275
  %v277 = vadd.f32 %v270, %v276
  %v278 = vmax.f32 %v277, 0.0
  %v279 = vld [vmem:[%s4] sm:$0xff]
  %v280 = vld [vmem:[%s4 + $0x8] sm:$0xff]
  %v281 = vld [vmem:[%s4 + $0x10] sm:$0xff]
  %v282 = vld [vmem:[%s4 + $0x18] sm:$0xff]
  %v283 = vlaneseq
  %v284 = vshrl.u32 %v283, 7
  %v285 = vsub.s32 2, %v284
  %v286 = vrot.slane %v26, %v285
  %v288 = vsel %vm109, %v278, 0
  %290 = vmatprep.subr.mxu0 0.0
  %291 = vmatpush1.msra.mxu0 %v279
  %292 = vmatprep.subr.mxu0 0.0
  %293 = vmatpush1.msra.mxu0 %v280
  %294 = vmatprep.subr.mxu0 0.0
  %295 = vmatpush1.msra.mxu0 %v281
  %296 = vmatprep.subr.mxu0 0.0
  %297 = vmatpush1.msra.mxu0 %v282
  %298 = vmatprep.subr.mxu0 0.0
  %299 = vmatpush1.msra.mxu0 0.0
  %300 = vmatprep.subr.mxu0 0.0
  %301 = vmatpush1.msra.mxu0 0.0
  %302 = vmatprep.subr.mxu0 0.0
  %303 = vmatpush1.msra.mxu0 0.0
  %304 = vmatprep.subr.mxu0 0.0
  %305 = vmatpush1.msra.mxu0 0.0
  %306 = vmatprep.subr.mxu0 0.0
  %307 = vmatpush1.msra.mxu0 0.0
  %308 = vmatprep.subr.mxu0 0.0
  %309 = vmatpush1.msra.mxu0 0.0
  %310 = vmatprep.subr.mxu0 0.0
  %311 = vmatpush1.msra.mxu0 0.0
  %312 = vmatprep.subr.mxu0 0.0
  %313 = vmatpush1.msra.mxu0 0.0
  %314 = vmatprep.subr.mxu0 0.0
  %315 = vmatpush1.msra.mxu0 0.0
  %316 = vmatprep.subr.mxu0 0.0
  %317 = vmatpush1.msra.mxu0 0.0
  %318 = vmatprep.subr.mxu0 0.0
  %319 = vmatpush1.msra.mxu0 0.0
  %320 = vmatprep.subr.mxu0 0.0
  %321 = vmatpush1.msra.mxu0 0.0
  %322 = vmatprep.subr.mxu0 0.0
  %323 = vmatpush1.msra.mxu0 0.0
  %324 = vmatprep.subr.mxu0 0.0
  %325 = vmatpush1.msra.mxu0 0.0
  %326 = vmatprep.subr.mxu0 0.0
  %327 = vmatpush1.msra.mxu0 0.0
  %328 = vmatprep.subr.mxu0 0.0
  %329 = vmatpush1.msra.mxu0 0.0
  %330 = vmatprep.subr.mxu0 0.0
  %331 = vmatpush1.msra.mxu0 0.0
  %332 = vmatprep.subr.mxu0 0.0
  %333 = vmatpush1.msra.mxu0 0.0
  %334 = vmatprep.subr.mxu0 0.0
  %335 = vmatpush1.msra.mxu0 0.0
  %336 = vmatprep.subr.mxu0 0.0
  %337 = vmatpush1.msra.mxu0 0.0
  %338 = vmatprep.subr.mxu0 0.0
  %339 = vmatpush1.msra.mxu0 0.0
  %340 = vmatprep.subr.mxu0 0.0
  %341 = vmatpush1.msra.mxu0 0.0
  %342 = vmatprep.subr.mxu0 0.0
  %343 = vmatpush1.msra.mxu0 0.0
  %344 = vmatprep.subr.mxu0 0.0
  %345 = vmatpush1.msra.mxu0 0.0
  %346 = vmatprep.subr.mxu0 0.0
  %347 = vmatpush1.msra.mxu0 0.0
  %348 = vmatprep.subr.mxu0 0.0
  %349 = vmatpush1.msra.mxu0 0.0
  %350 = vmatprep.subr.mxu0 0.0
  %351 = vmatpush1.msra.mxu0 0.0
  %352 = vmatprep.subr.mxu0 0.0
  %353 = vmatpush1.msra.mxu0 0.0
  %354 = vmatprep.mubr.f32.mxu0 0.0
  %355 = vmatmul.mubr.f32.gmra.mrb[0].mxu0 %v288
  %v356 = vpop.f32.mrb[0].mxu0
  %v357 = vadd.f32 %v286, %v356
  %v358 = vpop.f32.mrb[0].mxu0
  %359 = vdwg.mxu0
  %v360 = vmax.f32 %v357, 0.0
  %v361 = vld [vmem:[%s5] sm:$0xff]
  %v362 = vld [vmem:[%s5 + $0x8] sm:$0xff]
  %v363 = vld [vmem:[%s5 + $0x10] sm:$0xff]
  %v364 = vld [vmem:[%s5 + $0x18] sm:$0xff]
  %v365 = vlaneseq
  %v366 = vshrl.u32 %v365, 7
  %v367 = vsub.s32 3, %v366
  %v368 = vrot.slane %v26, %v367
  %v370 = vsel %vm109, %v360, 0
  %372 = vmatprep.subr.mxu0 0.0
  %373 = vmatpush1.msra.mxu0 %v361
  %374 = vmatprep.subr.mxu0 0.0
  %375 = vmatpush1.msra.mxu0 %v362
  %376 = vmatprep.subr.mxu0 0.0
  %377 = vmatpush1.msra.mxu0 %v363
  %378 = vmatprep.subr.mxu0 0.0
  %379 = vmatpush1.msra.mxu0 %v364
  %380 = vmatprep.subr.mxu0 0.0
  %381 = vmatpush1.msra.mxu0 0.0
  %382 = vmatprep.subr.mxu0 0.0
  %383 = vmatpush1.msra.mxu0 0.0
  %384 = vmatprep.subr.mxu0 0.0
  %385 = vmatpush1.msra.mxu0 0.0
  %386 = vmatprep.subr.mxu0 0.0
  %387 = vmatpush1.msra.mxu0 0.0
  %388 = vmatprep.subr.mxu0 0.0
  %389 = vmatpush1.msra.mxu0 0.0
  %390 = vmatprep.subr.mxu0 0.0
  %391 = vmatpush1.msra.mxu0 0.0
  %392 = vmatprep.subr.mxu0 0.0
  %393 = vmatpush1.msra.mxu0 0.0
  %394 = vmatprep.subr.mxu0 0.0
  %395 = vmatpush1.msra.mxu0 0.0
  %396 = vmatprep.subr.mxu0 0.0
  %397 = vmatpush1.msra.mxu0 0.0
  %398 = vmatprep.subr.mxu0 0.0
  %399 = vmatpush1.msra.mxu0 0.0
  %400 = vmatprep.subr.mxu0 0.0
  %401 = vmatpush1.msra.mxu0 0.0
  %402 = vmatprep.subr.mxu0 0.0
  %403 = vmatpush1.msra.mxu0 0.0
  %404 = vmatprep.subr.mxu0 0.0
  %405 = vmatpush1.msra.mxu0 0.0
  %406 = vmatprep.subr.mxu0 0.0
  %407 = vmatpush1.msra.mxu0 0.0
  %408 = vmatprep.subr.mxu0 0.0
  %409 = vmatpush1.msra.mxu0 0.0
  %410 = vmatprep.subr.mxu0 0.0
  %411 = vmatpush1.msra.mxu0 0.0
  %412 = vmatprep.subr.mxu0 0.0
  %413 = vmatpush1.msra.mxu0 0.0
  %414 = vmatprep.subr.mxu0 0.0
  %415 = vmatpush1.msra.mxu0 0.0
  %416 = vmatprep.subr.mxu0 0.0
  %417 = vmatpush1.msra.mxu0 0.0
  %418 = vmatprep.subr.mxu0 0.0
  %419 = vmatpush1.msra.mxu0 0.0
  %420 = vmatprep.subr.mxu0 0.0
  %421 = vmatpush1.msra.mxu0 0.0
  %422 = vmatprep.subr.mxu0 0.0
  %423 = vmatpush1.msra.mxu0 0.0
  %424 = vmatprep.subr.mxu0 0.0
  %425 = vmatpush1.msra.mxu0 0.0
  %426 = vmatprep.subr.mxu0 0.0
  %427 = vmatpush1.msra.mxu0 0.0
  %428 = vmatprep.subr.mxu0 0.0
  %429 = vmatpush1.msra.mxu0 0.0
  %430 = vmatprep.subr.mxu0 0.0
  %431 = vmatpush1.msra.mxu0 0.0
  %432 = vmatprep.subr.mxu0 0.0
  %433 = vmatpush1.msra.mxu0 0.0
  %434 = vmatprep.subr.mxu0 0.0
  %435 = vmatpush1.msra.mxu0 0.0
  %436 = vmatprep.mubr.f32.mxu0 0.0
  %437 = vmatmul.mubr.f32.gmra.mrb[0].mxu0 %v370
  %v438 = vpop.f32.mrb[0].mxu0
  %v439 = vadd.f32 %v368, %v438
  %v440 = vpop.f32.mrb[0].mxu0
  %441 = vdwg.mxu0
  %v442 = vtanh.pop %v439
  %443 = vst [vmem:[%s7] sm:$0xff] %v442
  // Predicated region
  $region30: #{_actor_forward.1} parent=0 // pred_check
    _
  $region31: #{_actor_forward.1} parent=0 // pred_check_branch
    %445 = sbr.rel (0) target = $region33
  $region32: #{_actor_forward.1} parent=0 // pred_region
    _
  $region33: #{_actor_forward.1} parent=0 // pred_fallthru
    _
  // Predicated region
  $region34: #{_actor_forward.1} parent=0 // pred_check
    _
  $region35: #{_actor_forward.1} parent=0 // pred_check_branch
    %447 = sbr.rel (0) target = $region37
  $region36: #{_actor_forward.1} parent=0 // pred_region
    _
  $region37: #{_actor_forward.1} parent=0 // pred_fallthru
    _

</llo_original>
